<compile_context>
chip_gen: v6e
topology: v6e:2x2x1
jax: 0.10.0
libtpu: 0.0.40
codegen_flags: <defaults>
</compile_context>

<pallas_src>
import jax
import jax.numpy as jnp
import numpy as np
from jax.experimental import pallas as pl
from jax.experimental.pallas import tpu as pltpu

GEM_P = 3.0        # SSCD uses GeM pooling with p=3
GEM_EPS = 1e-6
L2_EPS = 1e-12


def _sscd_kernel(x_ref, mean_ref, istd_ref, wt_ref, sel_ref, b_ref, o_ref):
    # x_ref   : (R, HW) f32, R = B*C rows (B images, C channel rows each)
    # mean_ref: (R, 1)  f32, per-row channel mean
    # istd_ref: (R, 1)  f32, per-row reciprocal std
    # wt_ref  : (R, E)  f32, projection weight tiled per image
    # sel_ref : (B, R)  f32, selection matrix summing the C channel rows per image
    # b_ref   : (1, E)  f32, projection bias
    # o_ref   : (B, E)  f32, L2-normalized embeddings (lane-dense block)
    x = x_ref[...]
    xn = (x - mean_ref[...]) * istd_ref[...]             # normalize (mul by 1/std)

    # GeM pooling over spatial positions, p = 3 (lane reduce on the XLU).
    # NOTE: matches the in-file reference (clamp at eps on signed normalized
    # pixels) — real SSCD applies GeM to non-negative backbone features.
    xc = jnp.maximum(xn, GEM_EPS)
    x3 = xc * xc * xc
    pooled = jnp.mean(x3, axis=-1, keepdims=True)         # (R, 1), strictly positive
    pooled = jnp.exp(jnp.log(pooled) * (1.0 / GEM_P))     # cube root (EUP is idle here)

    # Linear projection: per-row contribution, then one tiny MXU matmul that sums
    # the C channel rows of each image -> (B, E). Avoids sublane reduces/reshapes.
    contrib = pooled * wt_ref[...]                         # (R, E)
    proj = jnp.dot(sel_ref[...], contrib,
                   preferred_element_type=jnp.float32) + b_ref[...]   # (B, E)

    # L2 normalization of the embeddings.
    inv_norm = jax.lax.rsqrt(jnp.sum(proj * proj, axis=-1, keepdims=True) + L2_EPS)
    o_ref[...] = proj * inv_norm


def _vmem_budget():
    """(per-step input budget bytes, scoped vmem_limit_bytes), per generation."""
    try:
        vmem_bytes = int(pltpu.get_tpu_info().vmem_capacity_bytes)
    except Exception:
        vmem_bytes = 64 << 20          # conservative fallback (v7x-sized)
    if vmem_bytes >= (96 << 20):       # v5e / v6e: 128 MiB physical VMEM
        return 24 << 20, 80 << 20      # big blocks -> fewer steps, nearer HBM roofline
    return 8 << 20, 32 << 20           # v7x: 64 MiB physical VMEM -> keep blocks modest


def _pick_image_batch(N, C, HW, step_budget_bytes, itemsize=4, max_images=512):
    """Images per grid step (B) for the aligned main call.

    f32 rows: input block sublane dim B*C and output block sublane dim B must be
    multiples of 8, so B is a multiple of 8 images.  Returns 0 if N < 8 — the
    remainder path then handles everything in one full-extent block (no padding,
    no alignment constraint).
    """
    unit = 8
    if N < unit:
        return 0
    bytes_per_image = C * HW * itemsize
    # As many images as fit the per-step budget (at least one aligned unit).
    cap = max(unit, (step_budget_bytes // max(bytes_per_image, 1)) // unit * unit)
    # Hard cap keeps the auxiliary operands (selection matrix (B, B*C) and tiled
    # weights (B*C, E)) small even for tiny images; 512 images/step already
    # amortizes the ~0.35 us/step pipeline overhead completely.
    cap = min(cap, max(unit, (max_images // unit) * unit))
    # Keep >= 2 grid steps when N allows it (v7x shards the grid over 2 TCs).
    if N >= 2 * unit:
        cap = min(cap, max(unit, ((N // 2) // unit) * unit))
    return min(cap, (N // unit) * unit)


def _descriptor_call(x_rows, n_imgs, B, C, HW, E, mean, istd, w, b, vmem_limit):
    """One pallas_call over n_imgs images, B images per grid step (B | n_imgs).

    x_rows is the (possibly larger) (rows, HW) f32 slab; the grid only touches
    the first n_imgs*C rows, so no slicing/padding of the big input is needed.
    """
    steps = n_imgs // B
    R = B * C
    mean_t = jnp.tile(mean.reshape(C, 1).astype(jnp.float32), (B, 1))          # (R, 1)
    istd_t = jnp.tile(istd.reshape(C, 1).astype(jnp.float32), (B, 1))          # (R, 1)
    w_t = jnp.tile(w.astype(jnp.float32), (B, 1))                              # (R, E)
    sel = jnp.repeat(jnp.eye(B, dtype=jnp.float32), C, axis=1)                 # (B, R)
    b2 = b.reshape(1, E).astype(jnp.float32)

    return pl.pallas_call(
        _sscd_kernel,
        out_shape=jax.ShapeDtypeStruct((n_imgs, E), jnp.float32),
        grid=(steps,),
        in_specs=[
            pl.BlockSpec((R, HW), lambda i: (i, 0)),
            pl.BlockSpec((R, 1), lambda i: (0, 0)),
            pl.BlockSpec((R, 1), lambda i: (0, 0)),
            pl.BlockSpec((R, E), lambda i: (0, 0)),
            pl.BlockSpec((B, R), lambda i: (0, 0)),
            pl.BlockSpec((1, E), lambda i: (0, 0)),
        ],
        out_specs=pl.BlockSpec((B, E), lambda i: (i, 0)),
        compiler_params=pltpu.CompilerParams(
            dimension_semantics=("parallel",),
            vmem_limit_bytes=vmem_limit,
        ),
    )(x_rows, mean_t, istd_t, w_t, sel, b2)


def sscd_forward(images, mean, std, w, b):
    """images: (N, C, H, W) float32 in [0, 1]. Returns (N, E) L2-normalized embeddings."""
    N, C, H, W = images.shape
    HW = H * W
    E = w.shape[1]
    if images.dtype != jnp.float32:
        images = images.astype(jnp.float32)
    # Free layout change: (N,C,H,W) row-major -> (N*C, HW) row-major (no data movement).
    # Note: if HW is not a multiple of 128 the block lane dim equals the full array
    # dim, which Pallas allows (masked lane vregs at the edge).
    x_flat = images.reshape(N * C, HW)
    istd = 1.0 / std

    step_budget, vmem_limit = _vmem_budget()
    B = _pick_image_batch(N, C, HW, step_budget)
    n_full = (N // B) * B if B else 0
    rem = N - n_full

    outs = []
    if n_full:
        # Main call: reads the original array in place; the grid stops at the last
        # aligned block (no pad copy, no cast copy).
        outs.append(_descriptor_call(x_flat, n_full, B, C, HW, E,
                                     mean, istd, w, b, vmem_limit))
    if rem:
        # Tail (< one step's worth of images): single full-extent block, so no
        # sublane-alignment constraint. Only this small tail is ever sliced.
        x_tail = x_flat if n_full == 0 else x_flat[n_full * C:]
        outs.append(_descriptor_call(x_tail, rem, rem, C, HW, E,
                                     mean, istd, w, b, vmem_limit))
    return outs[0] if len(outs) == 1 else jnp.concatenate(outs, axis=0)


def sscd_reference(images, mean, std, w, b):
    """Pure-JAX reference for correctness checking."""
    N, C, H, W = images.shape
    x = images.reshape(N, C, H * W).astype(jnp.float32)
    xn = (x - mean.reshape(1, C, 1)) / std.reshape(1, C, 1)
    xc = jnp.maximum(xn, GEM_EPS)
    pooled = jnp.mean(xc ** 3, axis=-1) ** (1.0 / GEM_P)        # (N, C)
    proj = pooled @ w + b.reshape(1, -1)                         # (N, E)
    return proj / jnp.sqrt(jnp.sum(proj * proj, axis=-1, keepdims=True) + L2_EPS)


if __name__ == "__main__":
    # Small shapes consistent with the module: RGB images, 16x16 spatial, 128-dim
    # embedding (real SSCD: 288x288 inputs, 512-dim embeddings).  N=10 exercises
    # both the aligned main path (8 images/step) and the full-extent tail path.
    N, C, H, W, E = 10, 3, 16, 16, 128

    key = jax.random.PRNGKey(0)
    k_img, k_w, k_b = jax.random.split(key, 3)
    images = jax.random.uniform(k_img, (N, C, H, W), dtype=jnp.float32)  # ToTensor-style [0,1]

    # Exact preprocessing constants from the module's transforms.Normalize
    mean = jnp.array([0.485, 0.456, 0.406], dtype=jnp.float32)
    std = jnp.array([0.229, 0.224, 0.225], dtype=jnp.float32)

    # Deterministic synthetic descriptor-head parameters
    w = jax.random.normal(k_w, (C, E), dtype=jnp.float32) * 0.05
    b = jax.random.normal(k_b, (E,), dtype=jnp.float32) * 0.01

    fwd = jax.jit(sscd_forward)
    emb = jax.block_until_ready(fwd(images, mean, std, w, b))
    assert emb.shape == (N, E)

    # Full-f32 pipeline now: tight tolerance against the f32 reference.
    ref = sscd_reference(images, mean, std, w, b)
    np.testing.assert_allclose(np.asarray(emb), np.asarray(ref), rtol=1e-3, atol=1e-4)

    print("KERNEL_OK")
</pallas_src>

<mosaic_0001>
module attributes {stable_mosaic.version = 11 : i64} {
  func.func @_sscd_kernel(%arg0: i32, %arg1: memref<24x256xf32, #tpu.memory_space<vmem>>, %arg2: memref<24x1xf32, #tpu.memory_space<vmem>>, %arg3: memref<24x1xf32, #tpu.memory_space<vmem>>, %arg4: memref<24x128xf32, #tpu.memory_space<vmem>>, %arg5: memref<8x24xf32, #tpu.memory_space<vmem>>, %arg6: memref<1x128xf32, #tpu.memory_space<vmem>>, %arg7: memref<8x128xf32, #tpu.memory_space<vmem>>) attributes {dimension_semantics = [#tpu.dimension_semantics<parallel>], iteration_bounds = array<i64: 1>, scalar_prefetch = 0 : i64, scratch_operands = 0 : i64, tpu.core_type = #tpu.core_type<tc>, window_params = [{transform_indices = @transform_0, window_bounds = array<i64: 24, 256>}, {pipeline_mode = #tpu.pipeline_mode<synchronous>, transform_indices = @transform_1, window_bounds = array<i64: 24, 1>}, {pipeline_mode = #tpu.pipeline_mode<synchronous>, transform_indices = @transform_2, window_bounds = array<i64: 24, 1>}, {pipeline_mode = #tpu.pipeline_mode<synchronous>, transform_indices = @transform_3, window_bounds = array<i64: 24, 128>}, {pipeline_mode = #tpu.pipeline_mode<synchronous>, transform_indices = @transform_4, window_bounds = array<i64: 8, 24>}, {pipeline_mode = #tpu.pipeline_mode<synchronous>, transform_indices = @transform_5, window_bounds = array<i64: 1, 128>}, {transform_indices = @transform_6, window_bounds = array<i64: 8, 128>}]} {
    %c0 = arith.constant 0 : index
    %c0_0 = arith.constant 0 : index
    %0 = vector.load %arg1[%c0, %c0_0] : memref<24x256xf32, #tpu.memory_space<vmem>>, vector<24x256xf32>
    %c0_1 = arith.constant 0 : index
    %c0_2 = arith.constant 0 : index
    %1 = vector.load %arg2[%c0_1, %c0_2] : memref<24x1xf32, #tpu.memory_space<vmem>>, vector<24x1xf32>
    %2 = vector.broadcast %1 : vector<24x1xf32> to vector<24x256xf32>
    %3 = arith.subf %0, %2 : vector<24x256xf32>
    %c0_3 = arith.constant 0 : index
    %c0_4 = arith.constant 0 : index
    %4 = vector.load %arg3[%c0_3, %c0_4] : memref<24x1xf32, #tpu.memory_space<vmem>>, vector<24x1xf32>
    %5 = vector.broadcast %4 : vector<24x1xf32> to vector<24x256xf32>
    %6 = arith.mulf %3, %5 : vector<24x256xf32>
    %cst = arith.constant 9.99999997E-7 : f32
    %7 = vector.broadcast %cst : f32 to vector<24x256xf32>
    %8 = arith.maximumf %6, %7 : vector<24x256xf32>
    %9 = arith.mulf %8, %8 : vector<24x256xf32>
    %10 = arith.mulf %9, %8 : vector<24x256xf32>
    %cst_5 = arith.constant dense<0.000000e+00> : vector<24xf32>
    %11 = vector.multi_reduction <add>, %10, %cst_5 [1] : vector<24x256xf32> to vector<24xf32>
    %12 = vector.shape_cast %11 : vector<24xf32> to vector<24x1xf32>
    %cst_6 = arith.constant 2.560000e+02 : f32
    %13 = vector.broadcast %cst_6 : f32 to vector<24x1xf32>
    %14 = arith.divf %12, %13 : vector<24x1xf32>
    %15 = math.log %14 : vector<24x1xf32>
    %cst_7 = arith.constant 0.333333343 : f32
    %16 = vector.broadcast %cst_7 : f32 to vector<24x1xf32>
    %17 = arith.mulf %15, %16 : vector<24x1xf32>
    %18 = math.exp %17 : vector<24x1xf32>
    %c0_8 = arith.constant 0 : index
    %c0_9 = arith.constant 0 : index
    %19 = vector.load %arg4[%c0_8, %c0_9] : memref<24x128xf32, #tpu.memory_space<vmem>>, vector<24x128xf32>
    %20 = vector.broadcast %18 : vector<24x1xf32> to vector<24x128xf32>
    %21 = arith.mulf %20, %19 : vector<24x128xf32>
    %c0_10 = arith.constant 0 : index
    %c0_11 = arith.constant 0 : index
    %22 = vector.load %arg5[%c0_10, %c0_11] : memref<8x24xf32, #tpu.memory_space<vmem>>, vector<8x24xf32>
    %cst_12 = arith.constant dense<0.000000e+00> : vector<8x128xf32>
    %23 = tpu.matmul %22, %21, %cst_12 {dimension_numbers = #tpu.dot_dimension_numbers<[1], [0], [0], [1], [0, 0, 1, 1], [], []>} : vector<8x24xf32>, vector<24x128xf32>, vector<8x128xf32> -> vector<8x128xf32>
    %c0_13 = arith.constant 0 : index
    %c0_14 = arith.constant 0 : index
    %24 = vector.load %arg6[%c0_13, %c0_14] : memref<1x128xf32, #tpu.memory_space<vmem>>, vector<1x128xf32>
    %25 = vector.broadcast %24 : vector<1x128xf32> to vector<8x128xf32>
    %26 = arith.addf %23, %25 : vector<8x128xf32>
    %27 = arith.mulf %26, %26 : vector<8x128xf32>
    %cst_15 = arith.constant dense<0.000000e+00> : vector<8xf32>
    %28 = vector.multi_reduction <add>, %27, %cst_15 [1] : vector<8x128xf32> to vector<8xf32>
    %29 = vector.shape_cast %28 : vector<8xf32> to vector<8x1xf32>
    %cst_16 = arith.constant 9.99999996E-13 : f32
    %30 = vector.broadcast %cst_16 : f32 to vector<8x1xf32>
    %31 = arith.addf %29, %30 : vector<8x1xf32>
    %32 = math.rsqrt %31 : vector<8x1xf32>
    %33 = vector.broadcast %32 : vector<8x1xf32> to vector<8x128xf32>
    %34 = arith.mulf %26, %33 : vector<8x128xf32>
    %c0_17 = arith.constant 0 : index
    %c0_18 = arith.constant 0 : index
    %35 = vector.load %arg7[%c0_17, %c0_18] : memref<8x128xf32, #tpu.memory_space<vmem>>, vector<8x128xf32>
    tpu.vector_store %arg7[%c0_17, %c0_18], %34 {strides = array<i32>} : memref<8x128xf32, #tpu.memory_space<vmem>>, vector<8x128xf32>,
    return
  }
  func.func @transform_0(%arg0: i32) -> (i32, i32) {
    %c0_i32 = arith.constant 0 : i32
    %c0_i32_0 = arith.constant 0 : i32
    return %arg0, %c0_i32 : i32, i32
  }
  func.func @transform_1(%arg0: i32) -> (i32, i32) {
    %c0_i32 = arith.constant 0 : i32
    %c0_i32_0 = arith.constant 0 : i32
    %c0_i32_1 = arith.constant 0 : i32
    return %c0_i32, %c0_i32_0 : i32, i32
  }
  func.func @transform_2(%arg0: i32) -> (i32, i32) {
    %c0_i32 = arith.constant 0 : i32
    %c0_i32_0 = arith.constant 0 : i32
    %c0_i32_1 = arith.constant 0 : i32
    return %c0_i32, %c0_i32_0 : i32, i32
  }
  func.func @transform_3(%arg0: i32) -> (i32, i32) {
    %c0_i32 = arith.constant 0 : i32
    %c0_i32_0 = arith.constant 0 : i32
    %c0_i32_1 = arith.constant 0 : i32
    return %c0_i32, %c0_i32_0 : i32, i32
  }
  func.func @transform_4(%arg0: i32) -> (i32, i32) {
    %c0_i32 = arith.constant 0 : i32
    %c0_i32_0 = arith.constant 0 : i32
    %c0_i32_1 = arith.constant 0 : i32
    return %c0_i32, %c0_i32_0 : i32, i32
  }
  func.func @transform_5(%arg0: i32) -> (i32, i32) {
    %c0_i32 = arith.constant 0 : i32
    %c0_i32_0 = arith.constant 0 : i32
    %c0_i32_1 = arith.constant 0 : i32
    return %c0_i32, %c0_i32_0 : i32, i32
  }
  func.func @transform_6(%arg0: i32) -> (i32, i32) {
    %c0_i32 = arith.constant 0 : i32
    %c0_i32_0 = arith.constant 0 : i32
    return %arg0, %c0_i32 : i32, i32
  }
}

module attributes {stable_mosaic.version = 11 : i64} {
  func.func @_sscd_kernel(%arg0: i32, %arg1: memref<6x256xf32, #tpu.memory_space<vmem>>, %arg2: memref<6x1xf32, #tpu.memory_space<vmem>>, %arg3: memref<6x1xf32, #tpu.memory_space<vmem>>, %arg4: memref<6x128xf32, #tpu.memory_space<vmem>>, %arg5: memref<2x6xf32, #tpu.memory_space<vmem>>, %arg6: memref<1x128xf32, #tpu.memory_space<vmem>>, %arg7: memref<2x128xf32, #tpu.memory_space<vmem>>) attributes {dimension_semantics = [#tpu.dimension_semantics<parallel>], iteration_bounds = array<i64: 1>, scalar_prefetch = 0 : i64, scratch_operands = 0 : i64, tpu.core_type = #tpu.core_type<tc>, window_params = [{transform_indices = @transform_0, window_bounds = array<i64: 6, 256>}, {pipeline_mode = #tpu.pipeline_mode<synchronous>, transform_indices = @transform_1, window_bounds = array<i64: 6, 1>}, {pipeline_mode = #tpu.pipeline_mode<synchronous>, transform_indices = @transform_2, window_bounds = array<i64: 6, 1>}, {pipeline_mode = #tpu.pipeline_mode<synchronous>, transform_indices = @transform_3, window_bounds = array<i64: 6, 128>}, {pipeline_mode = #tpu.pipeline_mode<synchronous>, transform_indices = @transform_4, window_bounds = array<i64: 2, 6>}, {pipeline_mode = #tpu.pipeline_mode<synchronous>, transform_indices = @transform_5, window_bounds = array<i64: 1, 128>}, {transform_indices = @transform_6, window_bounds = array<i64: 2, 128>}]} {
    %c0 = arith.constant 0 : index
    %c0_0 = arith.constant 0 : index
    %0 = vector.load %arg1[%c0, %c0_0] : memref<6x256xf32, #tpu.memory_space<vmem>>, vector<6x256xf32>
    %c0_1 = arith.constant 0 : index
    %c0_2 = arith.constant 0 : index
    %1 = vector.load %arg2[%c0_1, %c0_2] : memref<6x1xf32, #tpu.memory_space<vmem>>, vector<6x1xf32>
    %2 = vector.broadcast %1 : vector<6x1xf32> to vector<6x256xf32>
    %3 = arith.subf %0, %2 : vector<6x256xf32>
    %c0_3 = arith.constant 0 : index
    %c0_4 = arith.constant 0 : index
    %4 = vector.load %arg3[%c0_3, %c0_4] : memref<6x1xf32, #tpu.memory_space<vmem>>, vector<6x1xf32>
    %5 = vector.broadcast %4 : vector<6x1xf32> to vector<6x256xf32>
    %6 = arith.mulf %3, %5 : vector<6x256xf32>
    %cst = arith.constant 9.99999997E-7 : f32
    %7 = vector.broadcast %cst : f32 to vector<6x256xf32>
    %8 = arith.maximumf %6, %7 : vector<6x256xf32>
    %9 = arith.mulf %8, %8 : vector<6x256xf32>
    %10 = arith.mulf %9, %8 : vector<6x256xf32>
    %cst_5 = arith.constant dense<0.000000e+00> : vector<6xf32>
    %11 = vector.multi_reduction <add>, %10, %cst_5 [1] : vector<6x256xf32> to vector<6xf32>
    %12 = vector.shape_cast %11 : vector<6xf32> to vector<6x1xf32>
    %cst_6 = arith.constant 2.560000e+02 : f32
    %13 = vector.broadcast %cst_6 : f32 to vector<6x1xf32>
    %14 = arith.divf %12, %13 : vector<6x1xf32>
    %15 = math.log %14 : vector<6x1xf32>
    %cst_7 = arith.constant 0.333333343 : f32
    %16 = vector.broadcast %cst_7 : f32 to vector<6x1xf32>
    %17 = arith.mulf %15, %16 : vector<6x1xf32>
    %18 = math.exp %17 : vector<6x1xf32>
    %c0_8 = arith.constant 0 : index
    %c0_9 = arith.constant 0 : index
    %19 = vector.load %arg4[%c0_8, %c0_9] : memref<6x128xf32, #tpu.memory_space<vmem>>, vector<6x128xf32>
    %20 = vector.broadcast %18 : vector<6x1xf32> to vector<6x128xf32>
    %21 = arith.mulf %20, %19 : vector<6x128xf32>
    %c0_10 = arith.constant 0 : index
    %c0_11 = arith.constant 0 : index
    %22 = vector.load %arg5[%c0_10, %c0_11] : memref<2x6xf32, #tpu.memory_space<vmem>>, vector<2x6xf32>
    %cst_12 = arith.constant dense<0.000000e+00> : vector<2x128xf32>
    %23 = tpu.matmul %22, %21, %cst_12 {dimension_numbers = #tpu.dot_dimension_numbers<[1], [0], [0], [1], [0, 0, 1, 1], [], []>} : vector<2x6xf32>, vector<6x128xf32>, vector<2x128xf32> -> vector<2x128xf32>
    %c0_13 = arith.constant 0 : index
    %c0_14 = arith.constant 0 : index
    %24 = vector.load %arg6[%c0_13, %c0_14] : memref<1x128xf32, #tpu.memory_space<vmem>>, vector<1x128xf32>
    %25 = vector.broadcast %24 : vector<1x128xf32> to vector<2x128xf32>
    %26 = arith.addf %23, %25 : vector<2x128xf32>
    %27 = arith.mulf %26, %26 : vector<2x128xf32>
    %cst_15 = arith.constant dense<0.000000e+00> : vector<2xf32>
    %28 = vector.multi_reduction <add>, %27, %cst_15 [1] : vector<2x128xf32> to vector<2xf32>
    %29 = vector.shape_cast %28 : vector<2xf32> to vector<2x1xf32>
    %cst_16 = arith.constant 9.99999996E-13 : f32
    %30 = vector.broadcast %cst_16 : f32 to vector<2x1xf32>
    %31 = arith.addf %29, %30 : vector<2x1xf32>
    %32 = math.rsqrt %31 : vector<2x1xf32>
    %33 = vector.broadcast %32 : vector<2x1xf32> to vector<2x128xf32>
    %34 = arith.mulf %26, %33 : vector<2x128xf32>
    %c0_17 = arith.constant 0 : index
    %c0_18 = arith.constant 0 : index
    %35 = vector.load %arg7[%c0_17, %c0_18] : memref<2x128xf32, #tpu.memory_space<vmem>>, vector<2x128xf32>
    tpu.vector_store %arg7[%c0_17, %c0_18], %34 {strides = array<i32>} : memref<2x128xf32, #tpu.memory_space<vmem>>, vector<2x128xf32>,
    return
  }
  func.func @transform_0(%arg0: i32) -> (i32, i32) {
    %c0_i32 = arith.constant 0 : i32
    %c0_i32_0 = arith.constant 0 : i32
    return %arg0, %c0_i32 : i32, i32
  }
  func.func @transform_1(%arg0: i32) -> (i32, i32) {
    %c0_i32 = arith.constant 0 : i32
    %c0_i32_0 = arith.constant 0 : i32
    %c0_i32_1 = arith.constant 0 : i32
    return %c0_i32, %c0_i32_0 : i32, i32
  }
  func.func @transform_2(%arg0: i32) -> (i32, i32) {
    %c0_i32 = arith.constant 0 : i32
    %c0_i32_0 = arith.constant 0 : i32
    %c0_i32_1 = arith.constant 0 : i32
    return %c0_i32, %c0_i32_0 : i32, i32
  }
  func.func @transform_3(%arg0: i32) -> (i32, i32) {
    %c0_i32 = arith.constant 0 : i32
    %c0_i32_0 = arith.constant 0 : i32
    %c0_i32_1 = arith.constant 0 : i32
    return %c0_i32, %c0_i32_0 : i32, i32
  }
  func.func @transform_4(%arg0: i32) -> (i32, i32) {
    %c0_i32 = arith.constant 0 : i32
    %c0_i32_0 = arith.constant 0 : i32
    %c0_i32_1 = arith.constant 0 : i32
    return %c0_i32, %c0_i32_0 : i32, i32
  }
  func.func @transform_5(%arg0: i32) -> (i32, i32) {
    %c0_i32 = arith.constant 0 : i32
    %c0_i32_0 = arith.constant 0 : i32
    %c0_i32_1 = arith.constant 0 : i32
    return %c0_i32, %c0_i32_0 : i32, i32
  }
  func.func @transform_6(%arg0: i32) -> (i32, i32) {
    %c0_i32 = arith.constant 0 : i32
    %c0_i32_0 = arith.constant 0 : i32
    return %arg0, %c0_i32 : i32, i32
  }
}

</mosaic_0001>

<llo_original>
// kernel: tile.38
$region0: #{tile.38}
  %s0 = inlined_call_operand.vmem [shape: f32[8,3,128], index: 0, kind: input, shape index: {}]
  %s1 = inlined_call_operand.vmem [shape: f32[24,128], index: 1, kind: output, shape index: {}]
  $region1: #{tile.38} parent=0
    #allocation0 [shape = 'u8[32768]{0}', space=vmem, size = 0x8000, scoped, tag = 'scoped mem for input reshape']
    %s3 = sshll.u32 1, 4
    %s4 = ssub.s32 %s3, 1
    %s5 = smul.addr 4, 7
    %s6 = scalar_lea.vmem %s0, %s5
    %v7 = vld [vmem:[%s6] sm:%s4]
    %s8 = scalar_lea.vmem [#allocation0], 56
    %9 = vst [vmem:[%s8] sm:%s4] %v7
    %s10 = smul.addr 4, 6
    %s11 = scalar_lea.vmem %s0, %s10
    %v12 = vld [vmem:[%s11] sm:%s4]
    %s13 = scalar_lea.vmem [#allocation0], 48
    %14 = vst [vmem:[%s13] sm:%s4] %v12
    %s15 = smul.addr 4, 5
    %s16 = scalar_lea.vmem %s0, %s15
    %v17 = vld [vmem:[%s16] sm:%s4]
    %s18 = scalar_lea.vmem [#allocation0], 40
    %19 = vst [vmem:[%s18] sm:%s4] %v17
    %s20 = smul.addr 4, 4
    %s21 = scalar_lea.vmem %s0, %s20
    %v22 = vld [vmem:[%s21] sm:%s4]
    %s23 = scalar_lea.vmem [#allocation0], 32
    %24 = vst [vmem:[%s23] sm:%s4] %v22
    %s25 = smul.addr 4, 3
    %s26 = scalar_lea.vmem %s0, %s25
    %v27 = vld [vmem:[%s26] sm:%s4]
    %s28 = scalar_lea.vmem [#allocation0], 24
    %29 = vst [vmem:[%s28] sm:%s4] %v27
    %s30 = smul.addr 4, 2
    %s31 = scalar_lea.vmem %s0, %s30
    %v32 = vld [vmem:[%s31] sm:%s4]
    %s33 = scalar_lea.vmem [#allocation0], 16
    %34 = vst [vmem:[%s33] sm:%s4] %v32
    %s35 = scalar_lea.vmem %s0, 4
    %v36 = vld [vmem:[%s35] sm:%s4]
    %s37 = scalar_lea.vmem [#allocation0], 8
    %38 = vst [vmem:[%s37] sm:%s4] %v36
    %v39 = vld [vmem:[%s0] sm:%s4]
    %40 = vst [vmem:[#allocation0] sm:%s4] %v39
    %v41 = vld [vmem:[#allocation0] sm:$0x7]
    %42 = vst [vmem:[%s1] sm:$0x7] %v41
    %s43 = scalar_lea.vmem [#allocation0], 8
    %v44 = vld [vmem:[%s43] sm:$0x7]
    %s45 = scalar_lea.vmem %s1, 3
    %46 = vst [vmem:[%s45] sm:$0x7] %v44
    %s47 = scalar_lea.vmem [#allocation0], 16
    %v48 = vld [vmem:[%s47] sm:$0x7]
    %s49 = scalar_lea.vmem %s1, 6
    %50 = vst [vmem:[%s49] sm:$0x7] %v48
    %s51 = scalar_lea.vmem [#allocation0], 24
    %v52 = vld [vmem:[%s51] sm:$0x7]
    %s53 = scalar_lea.vmem %s1, 9
    %54 = vst [vmem:[%s53] sm:$0x7] %v52
    %s55 = scalar_lea.vmem [#allocation0], 32
    %v56 = vld [vmem:[%s55] sm:$0x7]
    %s57 = scalar_lea.vmem %s1, 12
    %58 = vst [vmem:[%s57] sm:$0x7] %v56
    %s59 = scalar_lea.vmem [#allocation0], 40
    %v60 = vld [vmem:[%s59] sm:$0x7]
    %s61 = scalar_lea.vmem %s1, 15
    %62 = vst [vmem:[%s61] sm:$0x7] %v60
    %s63 = scalar_lea.vmem [#allocation0], 48
    %v64 = vld [vmem:[%s63] sm:$0x7]
    %s65 = scalar_lea.vmem %s1, 18
    %66 = vst [vmem:[%s65] sm:$0x7] %v64
    %s67 = scalar_lea.vmem [#allocation0], 56
    %v68 = vld [vmem:[%s67] sm:$0x7]
    %s69 = scalar_lea.vmem %s1, 21
    %70 = vst [vmem:[%s69] sm:$0x7] %v68

// kernel: tile.51
$region0: #{tile.51}
  %s0 = inlined_call_operand.vmem [shape: f32[2,3,128], index: 0, kind: input, shape index: {}]
  %s1 = inlined_call_operand.vmem [shape: f32[6,128], index: 1, kind: output, shape index: {}]
  $region1: #{tile.51} parent=0
    #allocation0 [shape = 'u8[8192]{0}', space=vmem, size = 0x2000, scoped, tag = 'scoped mem for input reshape']
    %s3 = sshll.u32 1, 4
    %s4 = ssub.s32 %s3, 1
    %s5 = scalar_lea.vmem %s0, 4
    %v6 = vld [vmem:[%s5] sm:%s4]
    %s7 = scalar_lea.vmem [#allocation0], 8
    %8 = vst [vmem:[%s7] sm:%s4] %v6
    %v9 = vld [vmem:[%s0] sm:%s4]
    %10 = vst [vmem:[#allocation0] sm:%s4] %v9
    %v11 = vld [vmem:[#allocation0] sm:$0x7]
    %12 = vst [vmem:[%s1] sm:$0x7] %v11
    %s13 = scalar_lea.vmem [#allocation0], 8
    %v14 = vld [vmem:[%s13] sm:$0x7]
    %s15 = scalar_lea.vmem %s1, 3
    %16 = vst [vmem:[%s15] sm:$0x7] %v14

// kernel: sscd_forward.2
$region0: #{sscd_forward.2}
  #allocation0 [shape = 'u32[]', space=smem, size = 0x4, offset = 0x4, fixed_abs, tag = 'smem constant byte address 0x4 - core index']
  #allocation1 [shape = 'u32[144,128]{1,0:T(1,128)}', space=vmem, size = 0x12000, scoped, tag = 'internal scratch']
  %s0 = inlined_call_operand.vmem [shape: f32[30,256], index: 0, kind: input, shape index: {}]
  %s1 = inlined_call_operand.vmem [shape: f32[24,1], index: 1, kind: input, shape index: {}]
  %s2 = inlined_call_operand.vmem [shape: f32[24,1], index: 2, kind: input, shape index: {}]
  %s3 = inlined_call_operand.vmem [shape: f32[24,128], index: 3, kind: input, shape index: {}]
  %s4 = inlined_call_operand.vmem [shape: f32[8,24], index: 4, kind: input, shape index: {}]
  %s5 = inlined_call_operand.vmem [shape: f32[1,128], index: 5, kind: input, shape index: {}]
  %s6 = inlined_call_operand.vmem [shape: f32[8,128], index: 6, kind: output, shape index: {}]
  %s7 = sld [smem:[#allocation0]]
  $region34: #{sscd_forward.2} parent=0
    _
  %s9 = ssub.s32 1, %s7
  %s10 = scalar_select 0, %s9, %s7
  // Predicated region
  $region2: #{sscd_forward.2} parent=0 // pred_check
    _
  $region3: #{sscd_forward.2} parent=0 // pred_check_branch
    %12 = sbr.rel (0) target = $region5
  $region4: #{sscd_forward.2} parent=0 // pred_region
    _
  $region5: #{sscd_forward.2} parent=0 // pred_fallthru
    _
  // Predicated region
  $region6: #{sscd_forward.2} parent=0 // pred_check
    _
  $region7: #{sscd_forward.2} parent=0 // pred_check_branch
    %14 = sbr.rel (0) target = $region9
  $region8: #{sscd_forward.2} parent=0 // pred_region
    _
  $region9: #{sscd_forward.2} parent=0 // pred_fallthru
    _
  // Predicated region
  $region10: #{sscd_forward.2} parent=0 // pred_check
    _
  $region11: #{sscd_forward.2} parent=0 // pred_check_branch
    %16 = sbr.rel (0) target = $region13
  $region12: #{sscd_forward.2} parent=0 // pred_region
    _
  $region13: #{sscd_forward.2} parent=0 // pred_fallthru
    _
  // Predicated region
  $region14: #{sscd_forward.2} parent=0 // pred_check
    _
  $region15: #{sscd_forward.2} parent=0 // pred_check_branch
    %18 = sbr.rel (0) target = $region17
  $region16: #{sscd_forward.2} parent=0 // pred_region
    _
  $region17: #{sscd_forward.2} parent=0 // pred_fallthru
    _
  // Predicated region
  $region18: #{sscd_forward.2} parent=0 // pred_check
    _
  $region19: #{sscd_forward.2} parent=0 // pred_check_branch
    %20 = sbr.rel (0) target = $region21
  $region20: #{sscd_forward.2} parent=0 // pred_region
    _
  $region21: #{sscd_forward.2} parent=0 // pred_fallthru
    _
  // Predicated region
  $region22: #{sscd_forward.2} parent=0 // pred_check
    _
  $region23: #{sscd_forward.2} parent=0 // pred_check_branch
    %22 = sbr.rel (0) target = $region25
  $region24: #{sscd_forward.2} parent=0 // pred_region
    _
  $region25: #{sscd_forward.2} parent=0 // pred_fallthru
    _
  %v23 = vld [vmem:[%s0] sm:$0xff]
  %v24 = vld [vmem:[%s0 + $0x8] sm:$0xff]
  %v25 = vld [vmem:[%s0 + $0x10] sm:$0xff]
  %v26 = vld [vmem:[%s0 + $0x18] sm:$0xff]
  %v27 = vld [vmem:[%s0 + $0x20] sm:$0xff]
  %v28 = vld [vmem:[%s0 + $0x28] sm:$0xff]
  %v29 = vld [vmem:[%s1] sm:$0xff]
  %v30 = vld [vmem:[%s1 + $0x8] sm:$0xff]
  %v31 = vld [vmem:[%s1 + $0x10] sm:$0xff]
  %33 = vset.pattern.permute.xlu0 0
  %34 = vperm.xlu0 %33, %v29
  %v35 = vpop.permute.xlu0 %34
  %38 = vset.pattern.permute.xlu0 0
  %39 = vperm.xlu0 %38, %v30
  %v40 = vpop.permute.xlu0 %39
  %43 = vset.pattern.permute.xlu0 0
  %44 = vperm.xlu0 %43, %v31
  %v45 = vpop.permute.xlu0 %44
  %v47 = vsub.f32 %v23, %v35
  %v48 = vsub.f32 %v24, %v35
  %v49 = vsub.f32 %v25, %v40
  %v50 = vsub.f32 %v26, %v40
  %v51 = vsub.f32 %v27, %v45
  %v52 = vsub.f32 %v28, %v45
  %v53 = vld [vmem:[%s2] sm:$0xff]
  %v54 = vld [vmem:[%s2 + $0x8] sm:$0xff]
  %v55 = vld [vmem:[%s2 + $0x10] sm:$0xff]
  %57 = vset.pattern.permute.xlu0 0
  %58 = vperm.xlu0 %57, %v53
  %v59 = vpop.permute.xlu0 %58
  %62 = vset.pattern.permute.xlu0 0
  %63 = vperm.xlu0 %62, %v54
  %v64 = vpop.permute.xlu0 %63
  %67 = vset.pattern.permute.xlu0 0
  %68 = vperm.xlu0 %67, %v55
  %v69 = vpop.permute.xlu0 %68
  %v71 = vmul.f32 %v47, %v59
  %v72 = vmul.f32 %v48, %v59
  %v73 = vmul.f32 %v49, %v64
  %v74 = vmul.f32 %v50, %v64
  %v75 = vmul.f32 %v51, %v69
  %v76 = vmul.f32 %v52, %v69
  %v77 = vmax.f32 %v71, 1e-06
  %v78 = vmax.f32 %v72, 1e-06
  %v79 = vmax.f32 %v73, 1e-06
  %v80 = vmax.f32 %v74, 1e-06
  %v81 = vmax.f32 %v75, 1e-06
  %v82 = vmax.f32 %v76, 1e-06
  %v83 = vmul.f32 %v77, %v77
  %v84 = vmul.f32 %v78, %v78
  %v85 = vmul.f32 %v79, %v79
  %v86 = vmul.f32 %v80, %v80
  %v87 = vmul.f32 %v81, %v81
  %v88 = vmul.f32 %v82, %v82
  %v89 = vmul.f32 %v83, %v77
  %v90 = vmul.f32 %v84, %v78
  %v91 = vmul.f32 %v85, %v79
  %v92 = vmul.f32 %v86, %v80
  %v93 = vmul.f32 %v87, %v81
  %v94 = vmul.f32 %v88, %v82
  %v95 = vadd.f32 %v89, %v90
  %96 = vadd.xlane.f32.xlu0 %v95
  %v97 = vpop.xlane.xlu0 %96
  %v98 = vadd.f32 %v91, %v92
  %99 = vadd.xlane.f32.xlu0 %v98
  %v100 = vpop.xlane.xlu0 %99
  %v101 = vadd.f32 %v93, %v94
  %102 = vadd.xlane.f32.xlu0 %v101
  %v103 = vpop.xlane.xlu0 %102
  %v104 = vrcp.pop 256.0
  %v105 = vmul.f32 %v97, %v104
  %v106 = vmul.f32 %v100, %v104
  %v107 = vmul.f32 %v103, %v104
  %v108 = vlog2.pop %v105
  %v109 = vmul.f32 %v108, 0.6931472
  %v110 = vlog2.pop %v106
  %v111 = vmul.f32 %v110, 0.6931472
  %v112 = vlog2.pop %v107
  %v113 = vmul.f32 %v112, 0.6931472
  %v114 = vmul.f32 %v109, 0.33333334
  %v115 = vmul.f32 %v111, 0.33333334
  %v116 = vmul.f32 %v113, 0.33333334
  %v117 = vmul.f32 %v114, 1.442695
  %v118 = vpow.pop %v117
  %v119 = vmul.f32 %v115, 1.442695
  %v120 = vpow.pop %v119
  %v121 = vmul.f32 %v116, 1.442695
  %v122 = vpow.pop %v121
  %v123 = vld [vmem:[%s3] sm:$0xff]
  %v124 = vld [vmem:[%s3 + $0x8] sm:$0xff]
  %v125 = vld [vmem:[%s3 + $0x10] sm:$0xff]
  %v126 = vmul.f32 %v118, %v123
  %v127 = vmul.f32 %v120, %v124
  %v128 = vmul.f32 %v122, %v125
  %v129 = vld [vmem:[%s4] sm:$0xff]
  %v130 = vld [vmem:[%s5] sm:$0x1]
  %v132 = vlaneseq
  %v133 = vshrl.u32 %v132, 7
  %v134 = vsub.s32 0, %v133
  %v135 = vrot.slane %v130, %v134
  %vm137 = vcmask 195584
  %v139 = vsel %vm137, %v129, 0
  %141 = vmatprep.subr.mxu0 0.0
  %142 = vmatpush1.msra.mxu0 0.0
  %143 = vmatprep.subr.mxu0 0.0
  %144 = vmatpush1.msra.mxu0 0.0
  %145 = vmatprep.subr.mxu0 0.0
  %146 = vmatpush1.msra.mxu0 0.0
  %147 = vmatprep.subr.mxu0 0.0
  %148 = vmatpush1.msra.mxu0 0.0
  %149 = vmatprep.subr.mxu0 0.0
  %150 = vmatpush1.msra.mxu0 0.0
  %151 = vmatprep.subr.mxu0 0.0
  %152 = vmatpush1.msra.mxu0 0.0
  %153 = vmatprep.subr.mxu0 0.0
  %154 = vmatpush1.msra.mxu0 0.0
  %155 = vmatprep.subr.mxu0 0.0
  %156 = vmatpush1.msra.mxu0 0.0
  %157 = vmatprep.subr.mxu0 0.0
  %158 = vmatpush1.msra.mxu0 0.0
  %159 = vmatprep.subr.mxu0 0.0
  %160 = vmatpush1.msra.mxu0 0.0
  %161 = vmatprep.subr.mxu0 0.0
  %162 = vmatpush1.msra.mxu0 0.0
  %163 = vmatprep.subr.mxu0 0.0
  %164 = vmatpush1.msra.mxu0 0.0
  %165 = vmatprep.subr.mxu0 0.0
  %166 = vmatpush1.msra.mxu0 0.0
  %167 = vmatprep.subr.mxu0 0.0
  %168 = vmatpush1.msra.mxu0 %v128
  %169 = vmatprep.subr.mxu0 0.0
  %170 = vmatpush1.msra.mxu0 %v127
  %171 = vmatprep.subr.mxu0 0.0
  %172 = vmatpush1.msra.mxu0 %v126
  %173 = vmatprep.subr.mxu0 0.0
  %174 = vmatpush2.msra.mxu0 0.0
  %175 = vmatprep.subr.mxu0 0.0
  %176 = vmatpush2.msra.mxu0 0.0
  %177 = vmatprep.subr.mxu0 0.0
  %178 = vmatpush2.msra.mxu0 0.0
  %179 = vmatprep.subr.mxu0 0.0
  %180 = vmatpush2.msra.mxu0 0.0
  %181 = vmatprep.subr.mxu0 0.0
  %182 = vmatpush2.msra.mxu0 0.0
  %183 = vmatprep.subr.mxu0 0.0
  %184 = vmatpush2.msra.mxu0 0.0
  %185 = vmatprep.subr.mxu0 0.0
  %186 = vmatpush2.msra.mxu0 0.0
  %187 = vmatprep.subr.mxu0 0.0
  %188 = vmatpush2.msra.mxu0 0.0
  %189 = vmatprep.subr.mxu0 0.0
  %190 = vmatpush2.msra.mxu0 0.0
  %191 = vmatprep.subr.mxu0 0.0
  %192 = vmatpush2.msra.mxu0 0.0
  %193 = vmatprep.subr.mxu0 0.0
  %194 = vmatpush2.msra.mxu0 0.0
  %195 = vmatprep.subr.mxu0 0.0
  %196 = vmatpush2.msra.mxu0 0.0
  %197 = vmatprep.subr.mxu0 0.0
  %198 = vmatpush2.msra.mxu0 0.0
  %199 = vmatprep.subr.mxu0 0.0
  %200 = vmatpush2.msra.mxu0 0.0
  %201 = vmatprep.subr.mxu0 0.0
  %202 = vmatpush2.msra.mxu0 0.0
  %203 = vmatprep.subr.mxu0 0.0
  %204 = vmatpush2.msra.mxu0 0.0
  %205 = vmatprep.mubr.f32.mxu0 0.0
  %206 = vmatmul.mubr.f32.gmra.mxu0 %v139
  %v207 = vpop.f32.mrf.mxu0
  %v208 = vadd.f32 %v135, %v207
  %v209 = vpop.f32.mrf.mxu0
  %210 = vdwg.mxu0
  %v211 = vmul.f32 %v208, %v208
  %212 = vadd.xlane.f32.xlu0 %v211
  %v213 = vpop.xlane.xlu0 %212
  %v214 = vadd.f32 %v213, 1e-12
  %v215 = vrsqrt.pop %v214
  %v216 = vmul.f32 %v208, %v215
  %217 = vst [vmem:[%s6] sm:$0xff] %v216
  // Predicated region
  $region26: #{sscd_forward.2} parent=0 // pred_check
    _
  $region27: #{sscd_forward.2} parent=0 // pred_check_branch
    %219 = sbr.rel (0) target = $region29
  $region28: #{sscd_forward.2} parent=0 // pred_region
    _
  $region29: #{sscd_forward.2} parent=0 // pred_fallthru
    _
  // Predicated region
  $region30: #{sscd_forward.2} parent=0 // pred_check
    _
  $region31: #{sscd_forward.2} parent=0 // pred_check_branch
    %221 = sbr.rel (0) target = $region33
  $region32: #{sscd_forward.2} parent=0 // pred_region
    _
  $region33: #{sscd_forward.2} parent=0 // pred_fallthru
    _

// kernel: sscd_forward.3
$region0: #{sscd_forward.3}
  #allocation0 [shape = 'u32[]', space=smem, size = 0x4, offset = 0x4, fixed_abs, tag = 'smem constant byte address 0x4 - core index']
  #allocation1 [shape = 'u32[144,128]{1,0:T(1,128)}', space=vmem, size = 0x12000, scoped, tag = 'internal scratch']
  %s0 = inlined_call_operand.vmem [shape: f32[6,256], index: 0, kind: input, shape index: {}]
  %s1 = inlined_call_operand.vmem [shape: f32[6,1], index: 1, kind: input, shape index: {}]
  %s2 = inlined_call_operand.vmem [shape: f32[6,1], index: 2, kind: input, shape index: {}]
  %s3 = inlined_call_operand.vmem [shape: f32[6,128], index: 3, kind: input, shape index: {}]
  %s4 = inlined_call_operand.vmem [shape: f32[2,6], index: 4, kind: input, shape index: {}]
  %s5 = inlined_call_operand.vmem [shape: f32[1,128], index: 5, kind: input, shape index: {}]
  %s6 = inlined_call_operand.vmem [shape: f32[2,128], index: 6, kind: output, shape index: {}]
  %s7 = sld [smem:[#allocation0]]
  $region34: #{sscd_forward.3} parent=0
    _
  %s9 = ssub.s32 1, %s7
  %s10 = scalar_select 0, %s9, %s7
  // Predicated region
  $region2: #{sscd_forward.3} parent=0 // pred_check
    _
  $region3: #{sscd_forward.3} parent=0 // pred_check_branch
    %12 = sbr.rel (0) target = $region5
  $region4: #{sscd_forward.3} parent=0 // pred_region
    _
  $region5: #{sscd_forward.3} parent=0 // pred_fallthru
    _
  // Predicated region
  $region6: #{sscd_forward.3} parent=0 // pred_check
    _
  $region7: #{sscd_forward.3} parent=0 // pred_check_branch
    %14 = sbr.rel (0) target = $region9
  $region8: #{sscd_forward.3} parent=0 // pred_region
    _
  $region9: #{sscd_forward.3} parent=0 // pred_fallthru
    _
  // Predicated region
  $region10: #{sscd_forward.3} parent=0 // pred_check
    _
  $region11: #{sscd_forward.3} parent=0 // pred_check_branch
    %16 = sbr.rel (0) target = $region13
  $region12: #{sscd_forward.3} parent=0 // pred_region
    _
  $region13: #{sscd_forward.3} parent=0 // pred_fallthru
    _
  // Predicated region
  $region14: #{sscd_forward.3} parent=0 // pred_check
    _
  $region15: #{sscd_forward.3} parent=0 // pred_check_branch
    %18 = sbr.rel (0) target = $region17
  $region16: #{sscd_forward.3} parent=0 // pred_region
    _
  $region17: #{sscd_forward.3} parent=0 // pred_fallthru
    _
  // Predicated region
  $region18: #{sscd_forward.3} parent=0 // pred_check
    _
  $region19: #{sscd_forward.3} parent=0 // pred_check_branch
    %20 = sbr.rel (0) target = $region21
  $region20: #{sscd_forward.3} parent=0 // pred_region
    _
  $region21: #{sscd_forward.3} parent=0 // pred_fallthru
    _
  // Predicated region
  $region22: #{sscd_forward.3} parent=0 // pred_check
    _
  $region23: #{sscd_forward.3} parent=0 // pred_check_branch
    %22 = sbr.rel (0) target = $region25
  $region24: #{sscd_forward.3} parent=0 // pred_region
    _
  $region25: #{sscd_forward.3} parent=0 // pred_fallthru
    _
  %v23 = vld [vmem:[%s0] sm:$0x3f]
  %v24 = vld [vmem:[%s0 + $0x8] sm:$0x3f]
  %v25 = vld [vmem:[%s1] sm:$0x3f]
  %27 = vset.pattern.permute.xlu0 0
  %28 = vperm.xlu0 %27, %v25
  %v29 = vpop.permute.xlu0 %28
  %v31 = vsub.f32 %v23, %v29
  %v32 = vsub.f32 %v24, %v29
  %v33 = vld [vmem:[%s2] sm:$0x3f]
  %35 = vset.pattern.permute.xlu0 0
  %36 = vperm.xlu0 %35, %v33
  %v37 = vpop.permute.xlu0 %36
  %v39 = vmul.f32 %v31, %v37
  %v40 = vmul.f32 %v32, %v37
  %v41 = vmax.f32 %v39, 1e-06
  %v42 = vmax.f32 %v40, 1e-06
  %v43 = vmul.f32 %v41, %v41
  %v44 = vmul.f32 %v42, %v42
  %v45 = vmul.f32 %v43, %v41
  %v46 = vmul.f32 %v44, %v42
  %vm47 = vcmask 1045504
  %v48 = vsel %vm47, %v45, 0.0
  %v49 = vsel %vm47, %v46, 0.0
  %v50 = vadd.f32 %v48, %v49
  %51 = vadd.xlane.f32.xlu0 %v50
  %v52 = vpop.xlane.xlu0 %51
  %v53 = vrcp.pop 256.0
  %v54 = vmul.f32 %v52, %v53
  %v55 = vlog2.pop %v54
  %v56 = vmul.f32 %v55, 0.6931472
  %v57 = vmul.f32 %v56, 0.33333334
  %v58 = vmul.f32 %v57, 1.442695
  %v59 = vpow.pop %v58
  %v60 = vld [vmem:[%s3] sm:$0x3f]
  %v61 = vmul.f32 %v59, %v60
  %v62 = vld [vmem:[%s4] sm:$0x3]
  %v63 = vld [vmem:[%s5] sm:$0x1]
  %v65 = vlaneseq
  %v66 = vshrl.u32 %v65, 7
  %v67 = vsub.s32 0, %v66
  %v68 = vrot.slane %v63, %v67
  %vm70 = vcmask 48128
  %v72 = vsel %vm70, %v62, 0
  %v75 = vsel %vm47, %v61, 0
  %77 = vmatprep.subr.mxu0 0.0
  %78 = vmatpush1.msra.mxu0 0.0
  %79 = vmatprep.subr.mxu0 0.0
  %80 = vmatpush1.msra.mxu0 0.0
  %81 = vmatprep.subr.mxu0 0.0
  %82 = vmatpush1.msra.mxu0 0.0
  %83 = vmatprep.subr.mxu0 0.0
  %84 = vmatpush1.msra.mxu0 0.0
  %85 = vmatprep.subr.mxu0 0.0
  %86 = vmatpush1.msra.mxu0 0.0
  %87 = vmatprep.subr.mxu0 0.0
  %88 = vmatpush1.msra.mxu0 0.0
  %89 = vmatprep.subr.mxu0 0.0
  %90 = vmatpush1.msra.mxu0 0.0
  %91 = vmatprep.subr.mxu0 0.0
  %92 = vmatpush1.msra.mxu0 0.0
  %93 = vmatprep.subr.mxu0 0.0
  %94 = vmatpush1.msra.mxu0 0.0
  %95 = vmatprep.subr.mxu0 0.0
  %96 = vmatpush1.msra.mxu0 0.0
  %97 = vmatprep.subr.mxu0 0.0
  %98 = vmatpush1.msra.mxu0 0.0
  %99 = vmatprep.subr.mxu0 0.0
  %100 = vmatpush1.msra.mxu0 0.0
  %101 = vmatprep.subr.mxu0 0.0
  %102 = vmatpush1.msra.mxu0 0.0
  %103 = vmatprep.subr.mxu0 0.0
  %104 = vmatpush1.msra.mxu0 0.0
  %105 = vmatprep.subr.mxu0 0.0
  %106 = vmatpush1.msra.mxu0 0.0
  %107 = vmatprep.subr.mxu0 0.0
  %108 = vmatpush1.msra.mxu0 %v75
  %109 = vmatprep.subr.mxu0 0.0
  %110 = vmatpush2.msra.mxu0 0.0
  %111 = vmatprep.subr.mxu0 0.0
  %112 = vmatpush2.msra.mxu0 0.0
  %113 = vmatprep.subr.mxu0 0.0
  %114 = vmatpush2.msra.mxu0 0.0
  %115 = vmatprep.subr.mxu0 0.0
  %116 = vmatpush2.msra.mxu0 0.0
  %117 = vmatprep.subr.mxu0 0.0
  %118 = vmatpush2.msra.mxu0 0.0
  %119 = vmatprep.subr.mxu0 0.0
  %120 = vmatpush2.msra.mxu0 0.0
  %121 = vmatprep.subr.mxu0 0.0
  %122 = vmatpush2.msra.mxu0 0.0
  %123 = vmatprep.subr.mxu0 0.0
  %124 = vmatpush2.msra.mxu0 0.0
  %125 = vmatprep.subr.mxu0 0.0
  %126 = vmatpush2.msra.mxu0 0.0
  %127 = vmatprep.subr.mxu0 0.0
  %128 = vmatpush2.msra.mxu0 0.0
  %129 = vmatprep.subr.mxu0 0.0
  %130 = vmatpush2.msra.mxu0 0.0
  %131 = vmatprep.subr.mxu0 0.0
  %132 = vmatpush2.msra.mxu0 0.0
  %133 = vmatprep.subr.mxu0 0.0
  %134 = vmatpush2.msra.mxu0 0.0
  %135 = vmatprep.subr.mxu0 0.0
  %136 = vmatpush2.msra.mxu0 0.0
  %137 = vmatprep.subr.mxu0 0.0
  %138 = vmatpush2.msra.mxu0 0.0
  %139 = vmatprep.subr.mxu0 0.0
  %140 = vmatpush2.msra.mxu0 0.0
  %141 = vmatprep.mubr.f32.mxu0 0.0
  %142 = vmatmul.mubr.f32.gmra.mxu0 %v72
  %v143 = vpop.f32.mrf.mxu0
  %v144 = vadd.f32 %v68, %v143
  %v145 = vpop.f32.mrf.mxu0
  %146 = vdwg.mxu0
  %v147 = vmul.f32 %v144, %v144
  %vm148 = vcmask 1041408
  %v149 = vsel %vm148, %v147, 0.0
  %150 = vadd.xlane.f32.xlu0 %v149
  %v151 = vpop.xlane.xlu0 %150
  %v152 = vadd.f32 %v151, 1e-12
  %v153 = vrsqrt.pop %v152
  %v154 = vmul.f32 %v144, %v153
  %155 = vst [vmem:[%s6] sm:$0x3] %v154
  // Predicated region
  $region26: #{sscd_forward.3} parent=0 // pred_check
    _
  $region27: #{sscd_forward.3} parent=0 // pred_check_branch
    %157 = sbr.rel (0) target = $region29
  $region28: #{sscd_forward.3} parent=0 // pred_region
    _
  $region29: #{sscd_forward.3} parent=0 // pred_fallthru
    _
  // Predicated region
  $region30: #{sscd_forward.3} parent=0 // pred_check
    _
  $region31: #{sscd_forward.3} parent=0 // pred_check_branch
    %159 = sbr.rel (0) target = $region33
  $region32: #{sscd_forward.3} parent=0 // pred_region
    _
  $region33: #{sscd_forward.3} parent=0 // pred_fallthru
    _

</llo_original>
